<compile_context>
chip_gen: v7x
topology: tpu7x:2x2x1
jax: 0.10.0
libtpu: 0.0.40
codegen_flags: <defaults>
</compile_context>

<pallas_src>
import functools
import math
from typing import Any, NamedTuple

import jax
import jax.numpy as jnp
from jax.experimental import pallas as pl
from jax.experimental.pallas import tpu as pltpu


# --------------------------------------------------------------------------------------
# Kernel
# --------------------------------------------------------------------------------------
def _lora_linear_kernel(x_ref, wt_ref, bias_ref, low_ref, b_ref, o_ref, acc_ref):
    # x_ref:    (tm, tk)  activation tile                (compute dtype)
    # wt_ref:   (tk, tn)  frozen weight, pre-transposed  (compute dtype)
    # bias_ref: (1,  tn)  bias                           (f32)
    # low_ref:  (tm, R)   low-rank projection x @ A, computed in the wrapper
    # b_ref:    (R,  tn)  lora_left_weight pre-scaled by lora_scaling
    # o_ref:    (tm, tn)  output tile
    # acc_ref:  (tm, tn)  f32 accumulator (persists across the K grid axis)
    k = pl.program_id(2)

    @pl.when(k == 0)
    def _():
        acc_ref[...] = jnp.zeros_like(acc_ref)

    acc_ref[...] += jnp.dot(x_ref[...], wt_ref[...],
                            preferred_element_type=jnp.float32)

    @pl.when(k == pl.num_programs(2) - 1)
    def _():
        lora = jnp.dot(low_ref[...], b_ref[...], preferred_element_type=jnp.float32)
        o_ref[...] = (acc_ref[...] + bias_ref[...] + lora).astype(o_ref.dtype)


# --------------------------------------------------------------------------------------
# Tiling helpers
# --------------------------------------------------------------------------------------
def _round_up(x, m):
    return pl.cdiv(x, m) * m


def _sublane_unit(dtype):
    # Packed sublane count: f32 -> 8, bf16/f16 -> 16, int8/fp8 -> 32.
    return max(8, 32 // jnp.dtype(dtype).itemsize)


def _pick_tile(dim, target, unit):
    """Pick (tile, padded_dim): tile is a multiple of `unit` that divides padded_dim,
    preferring divisors of the unit-rounded dim (no over-padding) near `target`."""
    p = _round_up(dim, unit)
    target = max(unit, (target // unit) * unit)
    if p <= (target * 3) // 2:          # whole (rounded) dim is one not-too-big tile
        return p, p
    for cand in range(target, unit - 1, -unit):
        if p % cand == 0:
            if cand * 2 >= target:      # largest divisor <= target, close enough
                return cand, p
            break
    return target, _round_up(p, target)  # no good divisor: pad up to a tile multiple


@functools.lru_cache(maxsize=None)
def _default_tile_targets_cached(dtype_name):
    itemsize = jnp.dtype(dtype_name).itemsize
    if itemsize >= 4:
        tm, tn, tk = 256, 256, 1024      # f32 operands: keep footprint modest
    else:
        tm, tn, tk = 512, 512, 1024      # bf16 default: ~6-8 MiB double-buffered
    try:
        # v5e / v6e have 128 MiB physical VMEM -> larger N/K tiles push toward the
        # compute-bound side of the roofline.  v7x (64 MiB) keeps the moderate tiles.
        if itemsize < 4 and pltpu.get_tpu_info().vmem_capacity_bytes >= (96 << 20):
            tm, tn, tk = 512, 1024, 1024
    except Exception:
        pass
    return tm, tn, tk


def _default_tile_targets(dtype):
    return _default_tile_targets_cached(jnp.dtype(dtype).name)


# --------------------------------------------------------------------------------------
# Setup-time parameter preparation (done ONCE, not per call)
# --------------------------------------------------------------------------------------
class LoRALinearParams(NamedTuple):
    wt: Any          # (Kp, Np) frozen W^T, compute dtype, padded to the tile grid
    bias2d: Any      # (1, Np)  f32
    a: Any           # (K, R)   lora_right ("A"), compute dtype (wrapper x@A GEMM)
    b_scaled: Any    # (R, Np)  lora_left * scaling ("B*s"), compute dtype
    in_features: int
    out_features: int
    lora_dim: int
    tn: int
    tk: int
    compute_dtype: Any


def prepare_lora_linear(weight, bias, lora_right, lora_left, lora_scaling, *,
                        compute_dtype=jnp.bfloat16, tn=None, tk=None):
    """One-time setup: transpose / cast / scale-fold / pad the frozen parameters.

    weight:       (out_features, in_features)  (PyTorch F.linear layout)
    bias:         (out_features,) or None
    lora_right:   (in_features, r)   "A"
    lora_left:    (r, out_features)  "B"
    lora_scaling: effective scale, i.e. module lora_scaling / lora_dim
    """
    N, K = weight.shape
    R = lora_right.shape[1]
    cdt = jnp.dtype(compute_dtype)

    _, tn_t, tk_t = _default_tile_targets(cdt)
    tn_pick, Np = _pick_tile(N, tn if tn is not None else tn_t, 128)
    tk_pick, Kp = _pick_tile(K, tk if tk is not None else tk_t, 128)

    wt = jnp.asarray(weight).T.astype(cdt)
    if (Kp, Np) != (K, N):
        wt = jnp.pad(wt, ((0, Kp - K), (0, Np - N)))

    if bias is None:
        bias2d = jnp.zeros((1, Np), jnp.float32)
    else:
        bias2d = jnp.asarray(bias, jnp.float32).reshape(1, N)
        if Np != N:
            bias2d = jnp.pad(bias2d, ((0, 0), (0, Np - N)))

    a = jnp.asarray(lora_right).astype(cdt)
    b_scaled = (jnp.asarray(lora_left, jnp.float32) * float(lora_scaling)).astype(cdt)
    if Np != N:
        b_scaled = jnp.pad(b_scaled, ((0, 0), (0, Np - N)))

    return LoRALinearParams(wt=wt, bias2d=bias2d, a=a, b_scaled=b_scaled,
                            in_features=K, out_features=N, lora_dim=R,
                            tn=tn_pick, tk=tk_pick, compute_dtype=cdt)


# --------------------------------------------------------------------------------------
# Forward
# --------------------------------------------------------------------------------------
def lora_linear(x, params: LoRALinearParams, *, tm=None):
    """LoRA linear forward: x (..., K) -> (..., N)."""
    K, N, R = params.in_features, params.out_features, params.lora_dim
    cdt = params.compute_dtype
    tn, tk = params.tn, params.tk
    Kp, Np = params.wt.shape
    assert x.shape[-1] == K, f"in_features mismatch: {x.shape[-1]} vs {K}"

    out_dtype = x.dtype
    orig_shape = x.shape
    x2d = x.reshape(-1, K)
    if x2d.dtype != cdt:
        x2d = x2d.astype(cdt)
    M = x2d.shape[0]

    unit_m = _sublane_unit(cdt)
    tm_target = tm if tm is not None else _default_tile_targets(cdt)[0]
    tm, Mp = _pick_tile(M, tm_target, unit_m)

    # Low-rank projection hoisted out of the kernel: a tiny M*K*R GEMM (f32 accumulate,
    # full precision), then cast to the compute dtype for the in-kernel (low @ B) matmul.
    low = jnp.dot(x2d, params.a, preferred_element_type=jnp.float32,
                  precision=jax.lax.Precision.HIGHEST).astype(cdt)

    if Mp != M or Kp != K:
        x2d = jnp.pad(x2d, ((0, Mp - M), (0, Kp - K)))
    if Mp != M:
        low = jnp.pad(low, ((0, Mp - M), (0, 0)))

    gm, gn, gk = Mp // tm, Np // tn, Kp // tk

    csz = cdt.itemsize
    osz = jnp.dtype(out_dtype).itemsize
    cost = pl.CostEstimate(
        flops=2 * M * N * K + 2 * M * R * N,
        transcendentals=0,
        bytes_accessed=int(gn * Mp * Kp * csz        # x re-read once per N tile
                           + gm * Kp * Np * csz      # W^T re-read once per M tile
                           + gm * Np * 4             # bias
                           + gn * Mp * R * csz       # low re-read once per N tile
                           + gm * R * Np * csz       # B*s
                           + Mp * Np * osz),         # output
    )

    # Double-buffered working set -> scoped VMEM request (headroom, capped so it stays
    # inside v7x's 64 MiB physical VMEM even for user-overridden large tiles).
    est = (2 * (tm * tk * csz + tk * tn * csz + tn * 4 + tm * R * csz + R * tn * csz
                + tm * tn * osz) + tm * tn * 4)
    vmem_limit = int(min(64 << 20, max(32 << 20, 2 * est)))

    out2d = pl.pallas_call(
        _lora_linear_kernel,
        out_shape=jax.ShapeDtypeStruct((Mp, Np), out_dtype),
        grid_spec=pltpu.PrefetchScalarGridSpec(
            num_scalar_prefetch=0,
            grid=(gm, gn, gk),
            in_specs=[
                pl.BlockSpec((tm, tk), lambda i, j, k: (i, k)),   # x tile
                # NOTE(v6e): if a profile shows exposed DMA on the W^T stream, try
                # pipeline_mode=pl.Buffered(3) on this spec and keep it only if it wins.
                pl.BlockSpec((tk, tn), lambda i, j, k: (k, j)),   # W^T tile
                pl.BlockSpec((1, tn),  lambda i, j, k: (0, j)),   # bias tile
                pl.BlockSpec((tm, R),  lambda i, j, k: (i, 0)),   # low = x @ A tile
                pl.BlockSpec((R, tn),  lambda i, j, k: (0, j)),   # B * scaling tile
            ],
            out_specs=pl.BlockSpec((tm, tn), lambda i, j, k: (i, j)),
            scratch_shapes=[pltpu.VMEM((tm, tn), jnp.float32)],   # x @ W^T accumulator
        ),
        compiler_params=pltpu.CompilerParams(
            dimension_semantics=("parallel", "parallel", "arbitrary"),
            vmem_limit_bytes=vmem_limit),
        cost_estimate=cost,
    )(x2d, params.wt, params.bias2d, low, params.b_scaled)

    if Mp != M or Np != N:
        out2d = out2d[:M, :N]
    return out2d.reshape(*orig_shape[:-1], N)


# --------------------------------------------------------------------------------------
# Test / demo
# --------------------------------------------------------------------------------------
def _kaiming_uniform(key, shape, a=math.sqrt(5), dtype=jnp.float32):
    # Matches torch.nn.init.kaiming_uniform_ (fan_in = shape[1], leaky_relu gain).
    fan_in = shape[1]
    gain = math.sqrt(2.0 / (1.0 + a * a))
    bound = gain * math.sqrt(3.0 / fan_in)
    return jax.random.uniform(key, shape, dtype=dtype, minval=-bound, maxval=bound)


def _ref_f32(x, weight, bias, A, B, scaling):
    mm = functools.partial(jnp.matmul, precision=jax.lax.Precision.HIGHEST)
    out = mm(x, weight.T)
    if bias is not None:
        out = out + bias
    return out + mm(mm(x, A), B) * scaling


def _ref_bf16(x, weight, bias, A, B, scaling):
    # Emulates the bf16 compute path: bf16-quantized operands, f32 accumulation,
    # low = x@A rounded to bf16 before (low @ B*s).
    mm = functools.partial(jnp.matmul, precision=jax.lax.Precision.HIGHEST)
    q = lambda t: jnp.asarray(t, jnp.float32).astype(jnp.bfloat16).astype(jnp.float32)
    xb, wtb, ab = q(x), q(weight.T), q(A)
    bsb = q(jnp.asarray(B, jnp.float32) * scaling)
    low = q(mm(xb, ab))
    out = mm(xb, wtb) + mm(low, bsb)
    if bias is not None:
        out = out + jnp.asarray(bias, jnp.float32)
    return out


if __name__ == "__main__":
    key = jax.random.PRNGKey(0)
    (k_x, k_w, k_b, k_a, k_l,
     k_x2, k_w2, k_b2, k_a2, k_l2,
     k_x3, k_w3, k_a3, k_l3) = jax.random.split(key, 14)

    # ----- Test 1: small module-sized shapes (single grid step), f32 + default bf16 ---
    batch, seq, in_f, out_f, r = 2, 8, 32, 32, 4
    scaling = 1.0 / r                               # module: lora_scaling=1 / lora_dim
    weight = jax.random.normal(k_w, (out_f, in_f), jnp.float32) * 0.02
    bias = jax.random.normal(k_b, (out_f,), jnp.float32) * 0.02
    A = _kaiming_uniform(k_a, (in_f, r))
    # Module init zeroes lora_left; use random values so the LoRA branch is exercised.
    B = jax.random.normal(k_l, (r, out_f), jnp.float32) * 0.02
    x = jax.random.normal(k_x, (batch, seq, in_f), jnp.float32)

    p_f32 = prepare_lora_linear(weight, bias, A, B, scaling, compute_dtype=jnp.float32)
    out = jax.block_until_ready(lora_linear(x, p_f32))
    ref = _ref_f32(x, weight, bias, A, B, scaling)
    assert out.shape == ref.shape
    assert jnp.allclose(out, ref, atol=1e-4, rtol=1e-4), "f32 small-shape mismatch"

    p_bf = prepare_lora_linear(weight, bias, A, B, scaling)   # bf16 compute by default
    out_bf = jax.block_until_ready(lora_linear(x, p_bf))
    ref_bf = _ref_bf16(x, weight, bias, A, B, scaling)
    assert jnp.allclose(out_bf, ref_bf, atol=2e-2, rtol=2e-2), "bf16 small-shape mismatch"

    # ----- Test 2: multi-tile (3,3,5) grid, f32 compute -------------------------------
    # Exercises K-axis accumulation, M/N tiling, and divisor-based tile selection
    # (N=384 with tn=128 -> no over-padding).
    b2, s2, k2, n2, r2 = 4, 96, 640, 384, 8
    scaling2 = 2.0 / r2
    weight2 = jax.random.normal(k_w2, (n2, k2), jnp.float32) * 0.02
    bias2 = jax.random.normal(k_b2, (n2,), jnp.float32) * 0.02
    A2 = _kaiming_uniform(k_a2, (k2, r2))
    B2 = jax.random.normal(k_l2, (r2, n2), jnp.float32) * 0.02
    x2 = jax.random.normal(k_x2, (b2, s2, k2), jnp.float32)

    p2 = prepare_lora_linear(weight2, bias2, A2, B2, scaling2,
                             compute_dtype=jnp.float32, tn=128, tk=256)
    out2 = jax.block_until_ready(lora_linear(x2, p2, tm=128))
    ref2 = _ref_f32(x2, weight2, bias2, A2, B2, scaling2)
    assert out2.shape == ref2.shape
    assert jnp.allclose(out2, ref2, atol=2e-3, rtol=2e-3), "f32 tiled-shape mismatch"

    # ----- Test 3: default bf16 path, odd (padded) shapes, bias=None ------------------
    b3, s3, k3, n3, r3 = 3, 10, 300, 200, 4
    scaling3 = 1.0 / r3
    weight3 = jax.random.normal(k_w3, (n3, k3), jnp.float32) * 0.02
    A3 = _kaiming_uniform(k_a3, (k3, r3))
    B3 = jax.random.normal(k_l3, (r3, n3), jnp.float32) * 0.02
    x3 = jax.random.normal(k_x3, (b3, s3, k3), jnp.float32)

    p3 = prepare_lora_linear(weight3, None, A3, B3, scaling3)
    out3 = jax.block_until_ready(lora_linear(x3, p3))
    ref3 = _ref_bf16(x3, weight3, None, A3, B3, scaling3)
    assert out3.shape == ref3.shape
    assert jnp.allclose(out3, ref3, atol=2e-2, rtol=2e-2), "bf16 padded-shape mismatch"

    print("KERNEL_OK")
</pallas_src>

<mosaic_0001>
module attributes {stable_mosaic.version = 11 : i64} {
  func.func @_lora_linear_kernel(%arg0: i32, %arg1: i32, %arg2: i32, %arg3: memref<16x128xf32, #tpu.memory_space<vmem>>, %arg4: memref<128x128xf32, #tpu.memory_space<vmem>>, %arg5: memref<1x128xf32, #tpu.memory_space<vmem>>, %arg6: memref<16x4xf32, #tpu.memory_space<vmem>>, %arg7: memref<4x128xf32, #tpu.memory_space<vmem>>, %arg8: memref<16x128xf32, #tpu.memory_space<vmem>>, %arg9: memref<16x128xf32, #tpu.memory_space<vmem>>) attributes {dimension_semantics = [#tpu.dimension_semantics<parallel>, #tpu.dimension_semantics<parallel>, #tpu.dimension_semantics<arbitrary>], iteration_bounds = array<i64: 1, 1, 1>, scalar_prefetch = 0 : i64, scratch_operands = 1 : i64, tpu.core_type = #tpu.core_type<tc>, window_params = [{transform_indices = @transform_0, window_bounds = array<i64: 16, 128>}, {transform_indices = @transform_1, window_bounds = array<i64: 128, 128>}, {transform_indices = @transform_2, window_bounds = array<i64: 1, 128>}, {transform_indices = @transform_3, window_bounds = array<i64: 16, 4>}, {transform_indices = @transform_4, window_bounds = array<i64: 4, 128>}, {transform_indices = @transform_5, window_bounds = array<i64: 16, 128>}]} {
    %c0_i32 = arith.constant 0 : i32
    %0 = arith.cmpi eq, %arg2, %c0_i32 : i32
    %1 = arith.extui %0 : i1 to i32
    %c0_i32_0 = arith.constant 0 : i32
    %2 = arith.cmpi ne, %1, %c0_i32_0 : i32
    scf.if %2 {
      %cst_10 = arith.constant 0.000000e+00 : f32
      %12 = vector.broadcast %cst_10 : f32 to vector<16x128xf32>
      %c0_11 = arith.constant 0 : index
      %c0_12 = arith.constant 0 : index
      %13 = vector.load %arg9[%c0_11, %c0_12] : memref<16x128xf32, #tpu.memory_space<vmem>>, vector<16x128xf32>
      tpu.vector_store %arg9[%c0_11, %c0_12], %12 {strides = array<i32>} : memref<16x128xf32, #tpu.memory_space<vmem>>, vector<16x128xf32>,
    } else {
    }
    %c0 = arith.constant 0 : index
    %c0_1 = arith.constant 0 : index
    %3 = vector.load %arg9[%c0, %c0_1] : memref<16x128xf32, #tpu.memory_space<vmem>>, vector<16x128xf32>
    %c0_2 = arith.constant 0 : index
    %c0_3 = arith.constant 0 : index
    %4 = vector.load %arg3[%c0_2, %c0_3] : memref<16x128xf32, #tpu.memory_space<vmem>>, vector<16x128xf32>
    %c0_4 = arith.constant 0 : index
    %c0_5 = arith.constant 0 : index
    %5 = vector.load %arg4[%c0_4, %c0_5] : memref<128x128xf32, #tpu.memory_space<vmem>>, vector<128x128xf32>
    %cst = arith.constant dense<0.000000e+00> : vector<16x128xf32>
    %6 = tpu.matmul %4, %5, %cst {dimension_numbers = #tpu.dot_dimension_numbers<[1], [0], [0], [1], [0, 0, 1, 1], [], []>} : vector<16x128xf32>, vector<128x128xf32>, vector<16x128xf32> -> vector<16x128xf32>
    %7 = arith.addf %3, %6 : vector<16x128xf32>
    %c0_6 = arith.constant 0 : index
    %c0_7 = arith.constant 0 : index
    %8 = vector.load %arg9[%c0_6, %c0_7] : memref<16x128xf32, #tpu.memory_space<vmem>>, vector<16x128xf32>
    tpu.vector_store %arg9[%c0_6, %c0_7], %7 {strides = array<i32>} : memref<16x128xf32, #tpu.memory_space<vmem>>, vector<16x128xf32>,
    %c0_i32_8 = arith.constant 0 : i32
    %9 = arith.cmpi eq, %arg2, %c0_i32_8 : i32
    %10 = arith.extui %9 : i1 to i32
    %c0_i32_9 = arith.constant 0 : i32
    %11 = arith.cmpi ne, %10, %c0_i32_9 : i32
    scf.if %11 {
      %c0_10 = arith.constant 0 : index
      %c0_11 = arith.constant 0 : index
      %12 = vector.load %arg6[%c0_10, %c0_11] : memref<16x4xf32, #tpu.memory_space<vmem>>, vector<16x4xf32>
      %c0_12 = arith.constant 0 : index
      %c0_13 = arith.constant 0 : index
      %13 = vector.load %arg7[%c0_12, %c0_13] : memref<4x128xf32, #tpu.memory_space<vmem>>, vector<4x128xf32>
      %cst_14 = arith.constant dense<0.000000e+00> : vector<16x128xf32>
      %14 = tpu.matmul %12, %13, %cst_14 {dimension_numbers = #tpu.dot_dimension_numbers<[1], [0], [0], [1], [0, 0, 1, 1], [], []>} : vector<16x4xf32>, vector<4x128xf32>, vector<16x128xf32> -> vector<16x128xf32>
      %c0_15 = arith.constant 0 : index
      %c0_16 = arith.constant 0 : index
      %15 = vector.load %arg9[%c0_15, %c0_16] : memref<16x128xf32, #tpu.memory_space<vmem>>, vector<16x128xf32>
      %c0_17 = arith.constant 0 : index
      %c0_18 = arith.constant 0 : index
      %16 = vector.load %arg5[%c0_17, %c0_18] : memref<1x128xf32, #tpu.memory_space<vmem>>, vector<1x128xf32>
      %17 = vector.broadcast %16 : vector<1x128xf32> to vector<16x128xf32>
      %18 = arith.addf %15, %17 : vector<16x128xf32>
      %19 = arith.addf %18, %14 : vector<16x128xf32>
      %c0_19 = arith.constant 0 : index
      %c0_20 = arith.constant 0 : index
      %20 = vector.load %arg8[%c0_19, %c0_20] : memref<16x128xf32, #tpu.memory_space<vmem>>, vector<16x128xf32>
      tpu.vector_store %arg8[%c0_19, %c0_20], %19 {strides = array<i32>} : memref<16x128xf32, #tpu.memory_space<vmem>>, vector<16x128xf32>,
    } else {
    }
    return
  }
  func.func @transform_0(%arg0: i32, %arg1: i32, %arg2: i32) -> (i32, i32) {
    %c0_i32 = arith.constant 0 : i32
    return %arg0, %arg2 : i32, i32
  }
  func.func @transform_1(%arg0: i32, %arg1: i32, %arg2: i32) -> (i32, i32) {
    %c0_i32 = arith.constant 0 : i32
    return %arg2, %arg1 : i32, i32
  }
  func.func @transform_2(%arg0: i32, %arg1: i32, %arg2: i32) -> (i32, i32) {
    %c0_i32 = arith.constant 0 : i32
    %c0_i32_0 = arith.constant 0 : i32
    return %c0_i32, %arg1 : i32, i32
  }
  func.func @transform_3(%arg0: i32, %arg1: i32, %arg2: i32) -> (i32, i32) {
    %c0_i32 = arith.constant 0 : i32
    %c0_i32_0 = arith.constant 0 : i32
    return %arg0, %c0_i32 : i32, i32
  }
  func.func @transform_4(%arg0: i32, %arg1: i32, %arg2: i32) -> (i32, i32) {
    %c0_i32 = arith.constant 0 : i32
    %c0_i32_0 = arith.constant 0 : i32
    return %c0_i32, %arg1 : i32, i32
  }
  func.func @transform_5(%arg0: i32, %arg1: i32, %arg2: i32) -> (i32, i32) {
    %c0_i32 = arith.constant 0 : i32
    return %arg0, %arg1 : i32, i32
  }
}

</mosaic_0001>

<llo_original>
// kernel: tpu_custom_call.1
$region0: #{tpu_custom_call.1}
  #allocation0 [shape = 'u32[]', space=smem, size = 0x4, offset = 0x4, fixed_abs, tag = 'smem constant byte address 0x4 - core index']
  #allocation1 [shape = 'u32[144,128]{1,0:T(1,128)}', space=vmem, size = 0x12000, scoped, tag = 'internal scratch']
  #allocation2 [shape = 'f32[16,128]{1,0:T(8,128)}', space=vmem, size = 0x2000, scoped, tag = 'scratch operand']
  %s0 = inlined_call_operand.vmem [shape: f32[16,128], index: 0, kind: input, shape index: {}]
  %s1 = inlined_call_operand.hbm [shape: f32[128,128], index: 1, kind: input, shape index: {}]
  %s2 = inlined_call_operand.vmem [shape: f32[1,128], index: 2, kind: input, shape index: {}]
  %s3 = inlined_call_operand.vmem [shape: f32[16,4], index: 3, kind: input, shape index: {}]
  %s4 = inlined_call_operand.vmem [shape: f32[4,128], index: 4, kind: input, shape index: {}]
  %s5 = inlined_call_operand.hbm [shape: f32[16,128], index: 5, kind: output, shape index: {}]
  %s6 = sld [smem:[#allocation0]]
  $region42: #{tpu_custom_call.1} parent=0
    _
  %s8 = ssub.s32 1, %s6
  %s9 = scalar_select 0, %s8, %s6
  $region1: #{tpu_custom_call.1} parent=0
    #allocation3 [shape = 'u8[65536]{0}', space=vmem, size = 0x10000, scoped, tag = 'input window, operand 1, single buffered']
    #allocation4 [shape = 's32[1]{0}', space=sflag, size = 0x4, scoped, tag = 'scoped memory for tpu_custom_call.1']
    #allocation5 [shape = 's32[1]{0}', space=sflag, size = 0x4, scoped, tag = 'scoped memory for tpu_custom_call.1']
    #allocation6 [shape = 'u8[8192]{0}', space=vmem, size = 0x2000, scoped, tag = 'output window, operand 0, single buffered']
    %10 = vsyncpa [#allocation4], 0
    %11 = vsyncpa [#allocation5], 0
    // Predicated region
    $region2: #{tpu_custom_call.1} parent=1 // pred_check
      _
    $region3: #{tpu_custom_call.1} parent=1 // pred_check_branch
      %13 = sbr.rel (0) target = $region5
    $region4: #{tpu_custom_call.1} parent=1 // pred_region
      _
    $region5: #{tpu_custom_call.1} parent=1 // pred_fallthru
      _
    // Predicated region
    $region6: #{tpu_custom_call.1} parent=1 // pred_check
      _
    $region7: #{tpu_custom_call.1} parent=1 // pred_check_branch
      %15 = sbr.rel (0) target = $region9
    $region8: #{tpu_custom_call.1} parent=1 // pred_region
      %s17 = ssub.s32 2048, 2048
      %18 = vsyncadd [#allocation4], %s17
      %s19 = sshll.u32 [#allocation3], 4
      %s20 = int_to_ptr.vmem [resolvable:$true] %s19
      %25 = dma.hbm_to_vmem [thread:$0]  %s1, 2048, %s20, [#allocation4], 128, 128, 8
    $region9: #{tpu_custom_call.1} parent=1 // pred_fallthru
      _
    // Predicated region
    $region10: #{tpu_custom_call.1} parent=1 // pred_check
      _
    $region11: #{tpu_custom_call.1} parent=1 // pred_check_branch
      %27 = sbr.rel (0) target = $region13
    $region12: #{tpu_custom_call.1} parent=1 // pred_region
      _
    $region13: #{tpu_custom_call.1} parent=1 // pred_fallthru
      _
    // Predicated region
    $region14: #{tpu_custom_call.1} parent=1 // pred_check
      _
    $region15: #{tpu_custom_call.1} parent=1 // pred_check_branch
      %29 = sbr.rel (0) target = $region17
    $region16: #{tpu_custom_call.1} parent=1 // pred_region
      _
    $region17: #{tpu_custom_call.1} parent=1 // pred_fallthru
      _
    // Predicated region
    $region18: #{tpu_custom_call.1} parent=1 // pred_check
      _
    $region19: #{tpu_custom_call.1} parent=1 // pred_check_branch
      %31 = sbr.rel (0) target = $region21
    $region20: #{tpu_custom_call.1} parent=1 // pred_region
      _
    $region21: #{tpu_custom_call.1} parent=1 // pred_fallthru
      _
    // Predicated region
    $region22: #{tpu_custom_call.1} parent=1 // pred_check
      _
    $region23: #{tpu_custom_call.1} parent=1 // pred_check_branch
      %33 = sbr.rel (0) target = $region25
    $region24: #{tpu_custom_call.1} parent=1 // pred_region
      %34 = dma.done [#allocation4], 2048
    $region25: #{tpu_custom_call.1} parent=1 // pred_fallthru
      _
    %p35 = scmp.eq.s32.totalorder 0, 0
    // Predicated region
    $region26: #{tpu_custom_call.1} parent=1 // pred_check
      %p36 = pneg %p35
    $region27: #{tpu_custom_call.1} parent=1 // pred_check_branch
      %38 = sbr.rel (%p36) target = $region29
    $region28: #{tpu_custom_call.1} parent=1 // pred_region
      %39 = vst [vmem:[#allocation2] sm:$0xff] 0.0
      %40 = vst [vmem:[#allocation2 + $0x8] sm:$0xff] 0.0
    $region29: #{tpu_custom_call.1} parent=1 // pred_fallthru
      _
    %v41 = vld [vmem:[#allocation2] sm:$0xff]
    %v42 = vld [vmem:[#allocation2 + $0x8] sm:$0xff]
    %v43 = vld [vmem:[%s0] sm:$0xff]
    %v44 = vld [vmem:[%s0 + $0x8] sm:$0xff]
    %v45 = vld [vmem:[#allocation3] sm:$0xff]
    %v46 = vld [vmem:[#allocation3 + $0x8] sm:$0xff]
    %v47 = vld [vmem:[#allocation3 + $0x10] sm:$0xff]
    %v48 = vld [vmem:[#allocation3 + $0x18] sm:$0xff]
    %v49 = vld [vmem:[#allocation3 + $0x20] sm:$0xff]
    %v50 = vld [vmem:[#allocation3 + $0x28] sm:$0xff]
    %v51 = vld [vmem:[#allocation3 + $0x30] sm:$0xff]
    %v52 = vld [vmem:[#allocation3 + $0x38] sm:$0xff]
    %v53 = vld [vmem:[#allocation3 + $0x40] sm:$0xff]
    %v54 = vld [vmem:[#allocation3 + $0x48] sm:$0xff]
    %v55 = vld [vmem:[#allocation3 + $0x50] sm:$0xff]
    %v56 = vld [vmem:[#allocation3 + $0x58] sm:$0xff]
    %v57 = vld [vmem:[#allocation3 + $0x60] sm:$0xff]
    %v58 = vld [vmem:[#allocation3 + $0x68] sm:$0xff]
    %v59 = vld [vmem:[#allocation3 + $0x70] sm:$0xff]
    %v60 = vld [vmem:[#allocation3 + $0x78] sm:$0xff]
    %61 = vmatprep.subr.mxu0 0.0
    %62 = vmatpush1.msra.mxu0 %v45
    %63 = vmatprep.subr.mxu0 0.0
    %64 = vmatpush1.msra.mxu0 %v46
    %65 = vmatprep.subr.mxu0 0.0
    %66 = vmatpush1.msra.mxu0 %v47
    %67 = vmatprep.subr.mxu0 0.0
    %68 = vmatpush1.msra.mxu0 %v48
    %69 = vmatprep.subr.mxu0 0.0
    %70 = vmatpush1.msra.mxu0 %v49
    %71 = vmatprep.subr.mxu0 0.0
    %72 = vmatpush1.msra.mxu0 %v50
    %73 = vmatprep.subr.mxu0 0.0
    %74 = vmatpush1.msra.mxu0 %v51
    %75 = vmatprep.subr.mxu0 0.0
    %76 = vmatpush1.msra.mxu0 %v52
    %77 = vmatprep.subr.mxu0 0.0
    %78 = vmatpush1.msra.mxu0 %v53
    %79 = vmatprep.subr.mxu0 0.0
    %80 = vmatpush1.msra.mxu0 %v54
    %81 = vmatprep.subr.mxu0 0.0
    %82 = vmatpush1.msra.mxu0 %v55
    %83 = vmatprep.subr.mxu0 0.0
    %84 = vmatpush1.msra.mxu0 %v56
    %85 = vmatprep.subr.mxu0 0.0
    %86 = vmatpush1.msra.mxu0 %v57
    %87 = vmatprep.subr.mxu0 0.0
    %88 = vmatpush1.msra.mxu0 %v58
    %89 = vmatprep.subr.mxu0 0.0
    %90 = vmatpush1.msra.mxu0 %v59
    %91 = vmatprep.subr.mxu0 0.0
    %92 = vmatpush1.msra.mxu0 %v60
    %93 = vmatprep.subr.mxu0 0.0
    %94 = vmatpush1.msra.mxu0 0.0
    %95 = vmatprep.subr.mxu0 0.0
    %96 = vmatpush1.msra.mxu0 0.0
    %97 = vmatprep.subr.mxu0 0.0
    %98 = vmatpush1.msra.mxu0 0.0
    %99 = vmatprep.subr.mxu0 0.0
    %100 = vmatpush1.msra.mxu0 0.0
    %101 = vmatprep.subr.mxu0 0.0
    %102 = vmatpush1.msra.mxu0 0.0
    %103 = vmatprep.subr.mxu0 0.0
    %104 = vmatpush1.msra.mxu0 0.0
    %105 = vmatprep.subr.mxu0 0.0
    %106 = vmatpush1.msra.mxu0 0.0
    %107 = vmatprep.subr.mxu0 0.0
    %108 = vmatpush1.msra.mxu0 0.0
    %109 = vmatprep.subr.mxu0 0.0
    %110 = vmatpush1.msra.mxu0 0.0
    %111 = vmatprep.subr.mxu0 0.0
    %112 = vmatpush1.msra.mxu0 0.0
    %113 = vmatprep.subr.mxu0 0.0
    %114 = vmatpush1.msra.mxu0 0.0
    %115 = vmatprep.subr.mxu0 0.0
    %116 = vmatpush1.msra.mxu0 0.0
    %117 = vmatprep.subr.mxu0 0.0
    %118 = vmatpush1.msra.mxu0 0.0
    %119 = vmatprep.subr.mxu0 0.0
    %120 = vmatpush1.msra.mxu0 0.0
    %121 = vmatprep.subr.mxu0 0.0
    %122 = vmatpush1.msra.mxu0 0.0
    %123 = vmatprep.subr.mxu0 0.0
    %124 = vmatpush1.msra.mxu0 0.0
    %125 = vmatprep.mubr.f32.mxu0 0.0
    %126 = vmatmul.mubr.f32.gmra.mrb[0].mxu0 %v43
    %v127 = vpop.f32.mrb[0].mxu0
    %v128 = vadd.f32 0.0, %v127
    %v129 = vpop.f32.mrb[0].mxu0
    %130 = vmatprep.mubr.f32.mxu0 0.0
    %131 = vmatmul.mubr.f32.gmra.mrb[0].mxu0 %v44
    %v132 = vpop.f32.mrb[0].mxu0
    %v133 = vadd.f32 0.0, %v132
    %v134 = vpop.f32.mrb[0].mxu0
    %135 = vdwg.mxu0
    %v136 = vadd.f32 %v41, %v128
    %v137 = vadd.f32 %v42, %v133
    %138 = vst [vmem:[#allocation2] sm:$0xff] %v136
    %139 = vst [vmem:[#allocation2 + $0x8] sm:$0xff] %v137
    // Predicated region
    $region30: #{tpu_custom_call.1} parent=1 // pred_check
      %p140 = pneg %p35
    $region31: #{tpu_custom_call.1} parent=1 // pred_check_branch
      %142 = sbr.rel (%p140) target = $region33
    $region32: #{tpu_custom_call.1} parent=1 // pred_region
      %v143 = vld [vmem:[%s3] sm:$0xff]
      %v144 = vld [vmem:[%s3 + $0x8] sm:$0xff]
      %v145 = vld [vmem:[%s4] sm:$0xf]
      %vm146 = vcmask 31744
      %v148 = vsel %vm146, %v143, 0
      %v151 = vsel %vm146, %v144, 0
      %vm153 = vcmask 1043456
      %v155 = vsel %vm153, %v145, 0
      %157 = vmatprep.subr.mxu0 0.0
      %158 = vmatpush1.msra.mxu0 %v155
      %159 = vmatprep.subr.mxu0 0.0
      %160 = vmatpush1.msra.mxu0 0.0
      %161 = vmatprep.subr.mxu0 0.0
      %162 = vmatpush1.msra.mxu0 0.0
      %163 = vmatprep.subr.mxu0 0.0
      %164 = vmatpush1.msra.mxu0 0.0
      %165 = vmatprep.subr.mxu0 0.0
      %166 = vmatpush1.msra.mxu0 0.0
      %167 = vmatprep.subr.mxu0 0.0
      %168 = vmatpush1.msra.mxu0 0.0
      %169 = vmatprep.subr.mxu0 0.0
      %170 = vmatpush1.msra.mxu0 0.0
      %171 = vmatprep.subr.mxu0 0.0
      %172 = vmatpush1.msra.mxu0 0.0
      %173 = vmatprep.subr.mxu0 0.0
      %174 = vmatpush1.msra.mxu0 0.0
      %175 = vmatprep.subr.mxu0 0.0
      %176 = vmatpush1.msra.mxu0 0.0
      %177 = vmatprep.subr.mxu0 0.0
      %178 = vmatpush1.msra.mxu0 0.0
      %179 = vmatprep.subr.mxu0 0.0
      %180 = vmatpush1.msra.mxu0 0.0
      %181 = vmatprep.subr.mxu0 0.0
      %182 = vmatpush1.msra.mxu0 0.0
      %183 = vmatprep.subr.mxu0 0.0
      %184 = vmatpush1.msra.mxu0 0.0
      %185 = vmatprep.subr.mxu0 0.0
      %186 = vmatpush1.msra.mxu0 0.0
      %187 = vmatprep.subr.mxu0 0.0
      %188 = vmatpush1.msra.mxu0 0.0
      %189 = vmatprep.subr.mxu0 0.0
      %190 = vmatpush1.msra.mxu0 0.0
      %191 = vmatprep.subr.mxu0 0.0
      %192 = vmatpush1.msra.mxu0 0.0
      %193 = vmatprep.subr.mxu0 0.0
      %194 = vmatpush1.msra.mxu0 0.0
      %195 = vmatprep.subr.mxu0 0.0
      %196 = vmatpush1.msra.mxu0 0.0
      %197 = vmatprep.subr.mxu0 0.0
      %198 = vmatpush1.msra.mxu0 0.0
      %199 = vmatprep.subr.mxu0 0.0
      %200 = vmatpush1.msra.mxu0 0.0
      %201 = vmatprep.subr.mxu0 0.0
      %202 = vmatpush1.msra.mxu0 0.0
      %203 = vmatprep.subr.mxu0 0.0
      %204 = vmatpush1.msra.mxu0 0.0
      %205 = vmatprep.subr.mxu0 0.0
      %206 = vmatpush1.msra.mxu0 0.0
      %207 = vmatprep.subr.mxu0 0.0
      %208 = vmatpush1.msra.mxu0 0.0
      %209 = vmatprep.subr.mxu0 0.0
      %210 = vmatpush1.msra.mxu0 0.0
      %211 = vmatprep.subr.mxu0 0.0
      %212 = vmatpush1.msra.mxu0 0.0
      %213 = vmatprep.subr.mxu0 0.0
      %214 = vmatpush1.msra.mxu0 0.0
      %215 = vmatprep.subr.mxu0 0.0
      %216 = vmatpush1.msra.mxu0 0.0
      %217 = vmatprep.subr.mxu0 0.0
      %218 = vmatpush1.msra.mxu0 0.0
      %219 = vmatprep.subr.mxu0 0.0
      %220 = vmatpush1.msra.mxu0 0.0
      %221 = vmatprep.mubr.f32.mxu0 0.0
      %222 = vmatmul.mubr.f32.gmra.mrb[0].mxu0 %v148
      %v223 = vpop.f32.mrb[0].mxu0
      %v224 = vadd.f32 0.0, %v223
      %v225 = vpop.f32.mrb[0].mxu0
      %226 = vmatprep.mubr.f32.mxu0 0.0
      %227 = vmatmul.mubr.f32.gmra.mrb[0].mxu0 %v151
      %v228 = vpop.f32.mrb[0].mxu0
      %v229 = vadd.f32 0.0, %v228
      %v230 = vpop.f32.mrb[0].mxu0
      %231 = vdwg.mxu0
      %v232 = vld [vmem:[#allocation2] sm:$0xff]
      %v233 = vld [vmem:[#allocation2 + $0x8] sm:$0xff]
      %v234 = vld [vmem:[%s2] sm:$0x1]
      %v236 = vlaneseq
      %v237 = vshrl.u32 %v236, 7
      %v238 = vsub.s32 0, %v237
      %v239 = vrot.slane %v234, %v238
      %v241 = vadd.f32 %v232, %v239
      %v242 = vadd.f32 %v233, %v239
      %v243 = vadd.f32 %v241, %v224
      %v244 = vadd.f32 %v242, %v229
      %245 = vst [vmem:[#allocation6] sm:$0xff] %v243
      %246 = vst [vmem:[#allocation6 + $0x8] sm:$0xff] %v244
    $region33: #{tpu_custom_call.1} parent=1 // pred_fallthru
      _
    // Predicated region
    $region34: #{tpu_custom_call.1} parent=1 // pred_check
      _
    $region35: #{tpu_custom_call.1} parent=1 // pred_check_branch
      %248 = sbr.rel (0) target = $region37
    $region36: #{tpu_custom_call.1} parent=1 // pred_region
      %s250 = ssub.s32 256, 256
      %251 = vsyncadd [#allocation5], %s250
      %s252 = sshll.u32 [#allocation6], 4
      %s253 = int_to_ptr.vmem [resolvable:$true] %s252
      %258 = dma.vmem_to_hbm [thread:$0]  %s253, 256, %s5, [#allocation5], 128, 128, 8
    $region37: #{tpu_custom_call.1} parent=1 // pred_fallthru
      _
    // Predicated region
    $region38: #{tpu_custom_call.1} parent=1 // pred_check
      _
    $region39: #{tpu_custom_call.1} parent=1 // pred_check_branch
      %260 = sbr.rel (0) target = $region41
    $region40: #{tpu_custom_call.1} parent=1 // pred_region
      %261 = dma.done [#allocation5], 256
    $region41: #{tpu_custom_call.1} parent=1 // pred_fallthru
      _
    %262 = vsyncpa [#allocation4], 1
    %263 = vsyncpa [#allocation5], 1

</llo_original>
